<compile_context>
chip_gen: v7x
topology: tpu7x:2x2x1
jax: 0.10.0
libtpu: 0.0.40
codegen_flags: <defaults>
</compile_context>

<pallas_src>
import math

import jax
import jax.numpy as jnp
from jax.experimental import pallas as pl
from jax.experimental.pallas import tpu as pltpu


def _attn_kernel(q_ref, k_ref, v_ref, m_ref, o_ref):
    # q/k/v: (BB, S, D) f32 tiles; m: (1, S, S) bf16; o: (BB, S, D) f32.
    d = q_ref.shape[-1]
    scale = 1.0 / math.sqrt(d)

    # bf16 operands -> single-pass MXU matmuls; accumulate/softmax in f32.
    q = (q_ref[...] * scale).astype(jnp.bfloat16)    # scale the small operand
    k = k_ref[...].astype(jnp.bfloat16)
    v = v_ref[...].astype(jnp.bfloat16)
    m = m_ref[0].astype(jnp.float32)                 # (S, S)

    # scores = (q*scale) @ k^T + mask (transpose via contraction dims).
    s = jnp.einsum("bqd,bkd->bqk", q, k,
                   preferred_element_type=jnp.float32)       # (BB, S, S) f32
    s = s + m[None]

    # Numerically-stable softmax; normalization deferred past the PV matmul.
    s_max = jnp.max(s, axis=-1, keepdims=True)
    p = jnp.exp(s - s_max)                                   # unnormalized
    denom = jnp.sum(p, axis=-1, keepdims=True)               # (BB, S, 1)

    out = jnp.einsum("bqk,bkd->bqd", p.astype(jnp.bfloat16), v,
                     preferred_element_type=jnp.float32)     # (BB, S, D) f32
    o_ref[...] = (out * pl.reciprocal(denom, approx=True)).astype(o_ref.dtype)


def _num_tensorcores_per_chip():
    # v7x has 2 TensorCores per chip; v5e/v6e have 1.
    try:
        kind = jax.devices()[0].device_kind.lower()
    except Exception:
        return 1
    return 2 if "v7" in kind else 1


def attention(q, k, v, mask):
    """q, k, v: (B, S, D) float32; mask: (1, S, S) float32 -> (B, S, D)."""
    B, S, D = q.shape
    assert k.shape == (B, S, D) and v.shape == (B, S, D)
    assert mask.shape == (1, S, S)

    # Stream the additive mask as bf16 (it only needs to be "very negative").
    mask_bf = mask.astype(jnp.bfloat16)

    # Collapse the grid on single-TC chips; split batch 2-way on v7x.
    ncores = _num_tensorcores_per_chip()
    n_steps = ncores if (ncores > 1 and B % ncores == 0) else 1
    BB = B // n_steps

    grid_spec = pltpu.PrefetchScalarGridSpec(
        num_scalar_prefetch=0,
        grid=(n_steps,),
        in_specs=[
            pl.BlockSpec((BB, S, D), lambda b: (b, 0, 0)),   # q
            pl.BlockSpec((BB, S, D), lambda b: (b, 0, 0)),   # k
            pl.BlockSpec((BB, S, D), lambda b: (b, 0, 0)),   # v
            pl.BlockSpec((1, S, S), lambda b: (0, 0, 0)),    # mask (broadcast)
        ],
        out_specs=pl.BlockSpec((BB, S, D), lambda b: (b, 0, 0)),
    )

    cost = pl.CostEstimate(
        flops=4 * B * S * S * D,               # two matmuls: 2*S*S*D each, per batch
        transcendentals=B * S * S,             # exp per score element
        bytes_accessed=(4 * B * S * D) * 4 + S * S * 2,
    )

    return pl.pallas_call(
        _attn_kernel,
        out_shape=jax.ShapeDtypeStruct((B, S, D), q.dtype),
        grid_spec=grid_spec,
        compiler_params=pltpu.CompilerParams(
            dimension_semantics=("parallel",),
        ),
        cost_estimate=cost,
    )(q, k, v, mask_bf)


def _reference(q, k, v, mask):
    s = jnp.einsum("bqd,bkd->bqk", q, k) / math.sqrt(q.shape[-1]) + mask
    p = jax.nn.softmax(s, axis=-1)
    return jnp.einsum("bqk,bkd->bqd", p, v)


if __name__ == "__main__":
    # Shapes consistent with the module: mask is (1, S, S) with S = 56
    # (mirrors the original 56x56 mask), head dim D = 32, batch B = 2.
    B, S, D = 2, 56, 32

    key = jax.random.PRNGKey(0)
    kq, kk, kv, km = jax.random.split(key, 4)

    q = jax.random.normal(kq, (B, S, D), dtype=jnp.float32)
    k = jax.random.normal(kk, (B, S, D), dtype=jnp.float32)
    v = jax.random.normal(kv, (B, S, D), dtype=jnp.float32)
    # Additive attention mask: large negative where rand > 0.7, else 0.
    mask = jnp.where(jax.random.uniform(km, (1, S, S)) > 0.7,
                     jnp.float32(-1e9), jnp.float32(0.0))

    out = jax.block_until_ready(attention(q, k, v, mask))

    ref = _reference(q, k, v, mask)
    assert out.shape == (B, S, D)
    # Tolerance sized for bf16 matmul operands + EUP approx reciprocal
    # (f32-accumulated); the f32 reference is bitwise tighter than this.
    assert jnp.allclose(out, ref, atol=2e-2, rtol=2e-2), "mismatch vs reference"

    print("KERNEL_OK")
</pallas_src>

<mosaic_0001>
module attributes {stable_mosaic.version = 11 : i64} {
  func.func @_attn_kernel(%arg0: i32, %arg1: memref<2x56x32xf32, #tpu.memory_space<vmem>>, %arg2: memref<2x56x32xf32, #tpu.memory_space<vmem>>, %arg3: memref<2x56x32xf32, #tpu.memory_space<vmem>>, %arg4: memref<1x56x56xbf16, #tpu.memory_space<vmem>>, %arg5: memref<2x56x32xf32, #tpu.memory_space<vmem>>) attributes {dimension_semantics = [#tpu.dimension_semantics<parallel>], iteration_bounds = array<i64: 1>, scalar_prefetch = 0 : i64, scratch_operands = 0 : i64, tpu.core_type = #tpu.core_type<tc>, window_params = [{transform_indices = @transform_0, window_bounds = array<i64: 2, 56, 32>}, {transform_indices = @transform_1, window_bounds = array<i64: 2, 56, 32>}, {transform_indices = @transform_2, window_bounds = array<i64: 2, 56, 32>}, {pipeline_mode = #tpu.pipeline_mode<synchronous>, transform_indices = @transform_3, window_bounds = array<i64: 1, 56, 56>}, {transform_indices = @transform_4, window_bounds = array<i64: 2, 56, 32>}]} {
    %c0 = arith.constant 0 : index
    %c0_0 = arith.constant 0 : index
    %c0_1 = arith.constant 0 : index
    %0 = vector.load %arg1[%c0, %c0_0, %c0_1] : memref<2x56x32xf32, #tpu.memory_space<vmem>>, vector<2x56x32xf32>
    %cst = arith.constant 0.176776692 : f32
    %1 = vector.broadcast %cst : f32 to vector<2x56x32xf32>
    %2 = arith.mulf %0, %1 : vector<2x56x32xf32>
    %3 = arith.truncf %2 : vector<2x56x32xf32> to vector<2x56x32xbf16>
    %c0_2 = arith.constant 0 : index
    %c0_3 = arith.constant 0 : index
    %c0_4 = arith.constant 0 : index
    %4 = vector.load %arg2[%c0_2, %c0_3, %c0_4] : memref<2x56x32xf32, #tpu.memory_space<vmem>>, vector<2x56x32xf32>
    %5 = arith.truncf %4 : vector<2x56x32xf32> to vector<2x56x32xbf16>
    %c0_5 = arith.constant 0 : index
    %c0_6 = arith.constant 0 : index
    %c0_7 = arith.constant 0 : index
    %6 = vector.load %arg3[%c0_5, %c0_6, %c0_7] : memref<2x56x32xf32, #tpu.memory_space<vmem>>, vector<2x56x32xf32>
    %7 = arith.truncf %6 : vector<2x56x32xf32> to vector<2x56x32xbf16>
    %c0_8 = arith.constant 0 : index
    %c0_9 = arith.constant 0 : index
    %c0_10 = arith.constant 0 : index
    %8 = vector.load %arg4[%c0_8, %c0_9, %c0_10] : memref<1x56x56xbf16, #tpu.memory_space<vmem>>, vector<1x56x56xbf16>
    %9 = vector.shape_cast %8 : vector<1x56x56xbf16> to vector<56x56xbf16>
    %10 = arith.extf %9 : vector<56x56xbf16> to vector<56x56xf32>
    "tpu.trace_start"() <{level = 10 : i32, message = "bqd,bkd->bqk"}> : () -> ()
    %cst_11 = arith.constant dense<0.000000e+00> : vector<2x56x56xf32>
    %11 = tpu.matmul %3, %5, %cst_11 {dimension_numbers = #tpu.dot_dimension_numbers<[2], [2], [1], [1], [0, 0, 0, 1, 1, 1], [0], [0]>} : vector<2x56x32xbf16>, vector<2x56x32xbf16>, vector<2x56x56xf32> -> vector<2x56x56xf32>
    "tpu.trace_stop"() : () -> ()
    %12 = vector.shape_cast %10 : vector<56x56xf32> to vector<1x56x56xf32>
    %13 = vector.broadcast %12 : vector<1x56x56xf32> to vector<2x56x56xf32>
    %14 = arith.addf %11, %13 : vector<2x56x56xf32>
    %cst_12 = arith.constant dense<0xFF800000> : vector<2x56xf32>
    %15 = vector.multi_reduction <maximumf>, %14, %cst_12 [2] : vector<2x56x56xf32> to vector<2x56xf32>
    %16 = vector.shape_cast %15 : vector<2x56xf32> to vector<2x56x1xf32>
    %17 = vector.broadcast %16 : vector<2x56x1xf32> to vector<2x56x56xf32>
    %18 = arith.subf %14, %17 : vector<2x56x56xf32>
    %19 = math.exp %18 : vector<2x56x56xf32>
    %cst_13 = arith.constant dense<0.000000e+00> : vector<2x56xf32>
    %20 = vector.multi_reduction <add>, %19, %cst_13 [2] : vector<2x56x56xf32> to vector<2x56xf32>
    %21 = vector.shape_cast %20 : vector<2x56xf32> to vector<2x56x1xf32>
    %22 = arith.truncf %19 : vector<2x56x56xf32> to vector<2x56x56xbf16>
    "tpu.trace_start"() <{level = 10 : i32, message = "bqk,bkd->bqd"}> : () -> ()
    %cst_14 = arith.constant dense<0.000000e+00> : vector<2x56x32xf32>
    %23 = tpu.matmul %22, %7, %cst_14 {dimension_numbers = #tpu.dot_dimension_numbers<[2], [1], [1], [2], [0, 0, 0, 1, 1, 2], [0], [0]>} : vector<2x56x56xbf16>, vector<2x56x32xbf16>, vector<2x56x32xf32> -> vector<2x56x32xf32>
    "tpu.trace_stop"() : () -> ()
    %24 = tpu.reciprocal %21 {approx = true} : vector<2x56x1xf32> -> vector<2x56x1xf32>
    %25 = vector.broadcast %24 : vector<2x56x1xf32> to vector<2x56x32xf32>
    %26 = arith.mulf %23, %25 : vector<2x56x32xf32>
    %c0_15 = arith.constant 0 : index
    %c0_16 = arith.constant 0 : index
    %c0_17 = arith.constant 0 : index
    %27 = vector.load %arg5[%c0_15, %c0_16, %c0_17] : memref<2x56x32xf32, #tpu.memory_space<vmem>>, vector<2x56x32xf32>
    tpu.vector_store %arg5[%c0_15, %c0_16, %c0_17], %26 {strides = array<i32>} : memref<2x56x32xf32, #tpu.memory_space<vmem>>, vector<2x56x32xf32>,
    return
  }
  func.func @transform_0(%arg0: i32) -> (i32, i32, i32) {
    %c0_i32 = arith.constant 0 : i32
    %c0_i32_0 = arith.constant 0 : i32
    %c0_i32_1 = arith.constant 0 : i32
    return %arg0, %c0_i32, %c0_i32_0 : i32, i32, i32
  }
  func.func @transform_1(%arg0: i32) -> (i32, i32, i32) {
    %c0_i32 = arith.constant 0 : i32
    %c0_i32_0 = arith.constant 0 : i32
    %c0_i32_1 = arith.constant 0 : i32
    return %arg0, %c0_i32, %c0_i32_0 : i32, i32, i32
  }
  func.func @transform_2(%arg0: i32) -> (i32, i32, i32) {
    %c0_i32 = arith.constant 0 : i32
    %c0_i32_0 = arith.constant 0 : i32
    %c0_i32_1 = arith.constant 0 : i32
    return %arg0, %c0_i32, %c0_i32_0 : i32, i32, i32
  }
  func.func @transform_3(%arg0: i32) -> (i32, i32, i32) {
    %c0_i32 = arith.constant 0 : i32
    %c0_i32_0 = arith.constant 0 : i32
    %c0_i32_1 = arith.constant 0 : i32
    %c0_i32_2 = arith.constant 0 : i32
    return %c0_i32, %c0_i32_0, %c0_i32_1 : i32, i32, i32
  }
  func.func @transform_4(%arg0: i32) -> (i32, i32, i32) {
    %c0_i32 = arith.constant 0 : i32
    %c0_i32_0 = arith.constant 0 : i32
    %c0_i32_1 = arith.constant 0 : i32
    return %arg0, %c0_i32, %c0_i32_0 : i32, i32, i32
  }
}

</mosaic_0001>

<llo_original>
// kernel: tpu_custom_call.1
$region0: #{tpu_custom_call.1}
  #allocation0 [shape = 'u32[]', space=smem, size = 0x4, offset = 0x4, fixed_abs, tag = 'smem constant byte address 0x4 - core index']
  #allocation1 [shape = 'u32[144,128]{1,0:T(1,128)}', space=vmem, size = 0x12000, scoped, tag = 'internal scratch']
  %s0 = inlined_call_operand.vmem [shape: f32[2,56,32], index: 0, kind: input, shape index: {}]
  %s1 = inlined_call_operand.vmem [shape: f32[2,56,32], index: 1, kind: input, shape index: {}]
  %s2 = inlined_call_operand.vmem [shape: f32[2,56,32], index: 2, kind: input, shape index: {}]
  %s3 = inlined_call_operand.vmem [shape: bf16[1,56,56], index: 3, kind: input, shape index: {}]
  %s4 = inlined_call_operand.vmem [shape: f32[2,56,32], index: 4, kind: output, shape index: {}]
  %s5 = sld [smem:[#allocation0]]
  $region26: #{tpu_custom_call.1} parent=0
    _
  %s7 = ssub.s32 1, %s5
  %s8 = scalar_select 0, %s7, %s5
  // Predicated region
  $region2: #{tpu_custom_call.1} parent=0 // pred_check
    _
  $region3: #{tpu_custom_call.1} parent=0 // pred_check_branch
    %10 = sbr.rel (0) target = $region5
  $region4: #{tpu_custom_call.1} parent=0 // pred_region
    _
  $region5: #{tpu_custom_call.1} parent=0 // pred_fallthru
    _
  // Predicated region
  $region6: #{tpu_custom_call.1} parent=0 // pred_check
    _
  $region7: #{tpu_custom_call.1} parent=0 // pred_check_branch
    %12 = sbr.rel (0) target = $region9
  $region8: #{tpu_custom_call.1} parent=0 // pred_region
    _
  $region9: #{tpu_custom_call.1} parent=0 // pred_fallthru
    _
  // Predicated region
  $region10: #{tpu_custom_call.1} parent=0 // pred_check
    _
  $region11: #{tpu_custom_call.1} parent=0 // pred_check_branch
    %14 = sbr.rel (0) target = $region13
  $region12: #{tpu_custom_call.1} parent=0 // pred_region
    _
  $region13: #{tpu_custom_call.1} parent=0 // pred_fallthru
    _
  // Predicated region
  $region14: #{tpu_custom_call.1} parent=0 // pred_check
    _
  $region15: #{tpu_custom_call.1} parent=0 // pred_check_branch
    %16 = sbr.rel (0) target = $region17
  $region16: #{tpu_custom_call.1} parent=0 // pred_region
    _
  $region17: #{tpu_custom_call.1} parent=0 // pred_fallthru
    _
  %v18 = vld [vmem:[%s0] sm:$0xff]
  %v19 = vld [vmem:[%s0 + $0x8] sm:$0xff]
  %v20 = vld [vmem:[%s0 + $0x10] sm:$0xff]
  %v21 = vld [vmem:[%s0 + $0x18] sm:$0xff]
  %v22 = vld [vmem:[%s0 + $0x20] sm:$0xff]
  %v23 = vld [vmem:[%s0 + $0x28] sm:$0xff]
  %v24 = vld [vmem:[%s0 + $0x30] sm:$0xff]
  %v25 = vld [vmem:[%s0 + $0x38] sm:$0xff]
  %v26 = vld [vmem:[%s0 + $0x40] sm:$0xff]
  %v27 = vld [vmem:[%s0 + $0x48] sm:$0xff]
  %v28 = vld [vmem:[%s0 + $0x50] sm:$0xff]
  %v29 = vld [vmem:[%s0 + $0x58] sm:$0xff]
  %v30 = vld [vmem:[%s0 + $0x60] sm:$0xff]
  %v31 = vld [vmem:[%s0 + $0x68] sm:$0xff]
  %v32 = vmul.f32 %v18, 0.17677669
  %v33 = vmul.f32 %v19, 0.17677669
  %v34 = vmul.f32 %v20, 0.17677669
  %v35 = vmul.f32 %v21, 0.17677669
  %v36 = vmul.f32 %v22, 0.17677669
  %v37 = vmul.f32 %v23, 0.17677669
  %v38 = vmul.f32 %v24, 0.17677669
  %v39 = vmul.f32 %v25, 0.17677669
  %v40 = vmul.f32 %v26, 0.17677669
  %v41 = vmul.f32 %v27, 0.17677669
  %v42 = vmul.f32 %v28, 0.17677669
  %v43 = vmul.f32 %v29, 0.17677669
  %v44 = vmul.f32 %v30, 0.17677669
  %v45 = vmul.f32 %v31, 0.17677669
  %v46 = vpack.c.bf16 %v33, %v32
  %v47 = vpack.c.bf16 %v35, %v34
  %v48 = vpack.c.bf16 %v37, %v36
  %v49 = vpack.c.bf16 %v38, %v38
  %v50 = vpack.c.bf16 %v40, %v39
  %v51 = vpack.c.bf16 %v42, %v41
  %v52 = vpack.c.bf16 %v44, %v43
  %v53 = vpack.c.bf16 %v45, %v45
  %v54 = vld [vmem:[%s1] sm:$0xff]
  %v55 = vld [vmem:[%s1 + $0x8] sm:$0xff]
  %v56 = vld [vmem:[%s1 + $0x10] sm:$0xff]
  %v57 = vld [vmem:[%s1 + $0x18] sm:$0xff]
  %v58 = vld [vmem:[%s1 + $0x20] sm:$0xff]
  %v59 = vld [vmem:[%s1 + $0x28] sm:$0xff]
  %v60 = vld [vmem:[%s1 + $0x30] sm:$0xff]
  %v61 = vld [vmem:[%s1 + $0x38] sm:$0xff]
  %v62 = vld [vmem:[%s1 + $0x40] sm:$0xff]
  %v63 = vld [vmem:[%s1 + $0x48] sm:$0xff]
  %v64 = vld [vmem:[%s1 + $0x50] sm:$0xff]
  %v65 = vld [vmem:[%s1 + $0x58] sm:$0xff]
  %v66 = vld [vmem:[%s1 + $0x60] sm:$0xff]
  %v67 = vld [vmem:[%s1 + $0x68] sm:$0xff]
  %v68 = vpack.c.bf16 %v55, %v54
  %v69 = vpack.c.bf16 %v57, %v56
  %v70 = vpack.c.bf16 %v59, %v58
  %v71 = vpack.c.bf16 %v60, %v60
  %v72 = vpack.c.bf16 %v62, %v61
  %v73 = vpack.c.bf16 %v64, %v63
  %v74 = vpack.c.bf16 %v66, %v65
  %v75 = vpack.c.bf16 %v67, %v67
  %v76 = vld [vmem:[%s2] sm:$0xff]
  %v77 = vld [vmem:[%s2 + $0x8] sm:$0xff]
  %v78 = vld [vmem:[%s2 + $0x10] sm:$0xff]
  %v79 = vld [vmem:[%s2 + $0x18] sm:$0xff]
  %v80 = vld [vmem:[%s2 + $0x20] sm:$0xff]
  %v81 = vld [vmem:[%s2 + $0x28] sm:$0xff]
  %v82 = vld [vmem:[%s2 + $0x30] sm:$0xff]
  %v83 = vld [vmem:[%s2 + $0x38] sm:$0xff]
  %v84 = vld [vmem:[%s2 + $0x40] sm:$0xff]
  %v85 = vld [vmem:[%s2 + $0x48] sm:$0xff]
  %v86 = vld [vmem:[%s2 + $0x50] sm:$0xff]
  %v87 = vld [vmem:[%s2 + $0x58] sm:$0xff]
  %v88 = vld [vmem:[%s2 + $0x60] sm:$0xff]
  %v89 = vld [vmem:[%s2 + $0x68] sm:$0xff]
  %v90 = vpack.c.bf16 %v77, %v76
  %v91 = vpack.c.bf16 %v79, %v78
  %v92 = vpack.c.bf16 %v81, %v80
  %v93 = vpack.c.bf16 %v82, %v82
  %v94 = vpack.c.bf16 %v84, %v83
  %v95 = vpack.c.bf16 %v86, %v85
  %v96 = vpack.c.bf16 %v88, %v87
  %v97 = vpack.c.bf16 %v89, %v89
  %v98 = vld [vmem:[%s3] sm:$0xf]
  %v99 = vld [vmem:[%s3 + $0x4] sm:$0xf]
  %v100 = vld [vmem:[%s3 + $0x8] sm:$0xf]
  %v101 = vld [vmem:[%s3 + $0xc] sm:$0xf]
  %v102 = vld [vmem:[%s3 + $0x10] sm:$0xf]
  %v103 = vld [vmem:[%s3 + $0x14] sm:$0xf]
  %v104 = vld [vmem:[%s3 + $0x18] sm:$0xf]
  %v105 = vunpack.c.l.bf16 %v98
  %v106 = vunpack.c.l.bf16 %v99
  %v107 = vunpack.c.l.bf16 %v100
  %v108 = vunpack.c.l.bf16 %v101
  %v109 = vunpack.c.l.bf16 %v102
  %v110 = vunpack.c.l.bf16 %v103
  %v111 = vunpack.c.l.bf16 %v104
  %vm112 = vcmask 261120
  %v114 = vsel %vm112, %v46, 0
  %v117 = vsel %vm112, %v47, 0
  %v120 = vsel %vm112, %v48, 0
  %v123 = vsel %vm112, %v49, 0
  %v126 = vsel %vm112, %v68, 0
  %v129 = vsel %vm112, %v69, 0
  %v132 = vsel %vm112, %v70, 0
  %v135 = vsel %vm112, %v71, 0
  %137 = vmatprep.subr.bf16.mxu0 0
  %138 = vmatpush1.bf16.xpose.msra.mxu0 %v126
  %139 = vmatprep.subr.bf16.mxu0 0
  %140 = vmatpush1.bf16.xpose.msra.mxu0 %v129
  %141 = vmatprep.subr.bf16.mxu0 0
  %142 = vmatpush1.bf16.xpose.msra.mxu0 %v132
  %143 = vmatprep.subr.bf16.mxu0 0
  %144 = vmatpush1.bf16.xpose.msra.mxu0 %v135
  %145 = vmatprep.subr.bf16.mxu0 0
  %146 = vmatpush1.bf16.xpose.msra.mxu0 0
  %147 = vmatprep.subr.bf16.mxu0 0
  %148 = vmatpush1.bf16.xpose.msra.mxu0 0
  %149 = vmatprep.subr.bf16.mxu0 0
  %150 = vmatpush1.bf16.xpose.msra.mxu0 0
  %151 = vmatprep.subr.bf16.mxu0 0
  %152 = vmatpush1.bf16.xpose.msra.mxu0 0
  %153 = vmatprep.subr.bf16.mxu0 0
  %154 = vmatpush1.bf16.xpose.msra.mxu0 0
  %155 = vmatprep.subr.bf16.mxu0 0
  %156 = vmatpush1.bf16.xpose.msra.mxu0 0
  %157 = vmatprep.subr.bf16.mxu0 0
  %158 = vmatpush1.bf16.xpose.msra.mxu0 0
  %159 = vmatprep.subr.bf16.mxu0 0
  %160 = vmatpush1.bf16.xpose.msra.mxu0 0
  %161 = vmatprep.subr.bf16.mxu0 0
  %162 = vmatpush1.bf16.xpose.msra.mxu0 0
  %163 = vmatprep.subr.bf16.mxu0 0
  %164 = vmatpush1.bf16.xpose.msra.mxu0 0
  %165 = vmatprep.subr.bf16.mxu0 0
  %166 = vmatpush1.bf16.xpose.msra.mxu0 0
  %167 = vmatprep.subr.bf16.mxu0 0
  %168 = vmatpush1.bf16.xpose.msra.mxu0 0
  %169 = vmatprep.mubr.bf16.mxu0 0
  %170 = vmatmul.mubr.bf16.gmra.mrb[0].mxu0 %v114
  %v171 = vpop.f32.mrb[0].mxu0
  %v172 = vadd.f32 %v105, %v171
  %v173 = vpop.f32.mrb[0].mxu0
  %v174 = vpop.f32.mrb[0].mxu0
  %v175 = vadd.f32 %v106, %v174
  %v176 = vpop.f32.mrb[0].mxu0
  %177 = vmatprep.mubr.bf16.mxu0 0
  %178 = vmatmul.mubr.bf16.gmra.mrb[0].mxu0 %v117
  %v179 = vpop.f32.mrb[0].mxu0
  %v180 = vadd.f32 %v107, %v179
  %v181 = vpop.f32.mrb[0].mxu0
  %v182 = vpop.f32.mrb[0].mxu0
  %v183 = vadd.f32 %v108, %v182
  %v184 = vpop.f32.mrb[0].mxu0
  %185 = vmatprep.mubr.bf16.mxu0 0
  %186 = vmatmul.mubr.bf16.gmra.mrb[0].mxu0 %v120
  %v187 = vpop.f32.mrb[0].mxu0
  %v188 = vadd.f32 %v109, %v187
  %v189 = vpop.f32.mrb[0].mxu0
  %v190 = vpop.f32.mrb[0].mxu0
  %v191 = vadd.f32 %v110, %v190
  %v192 = vpop.f32.mrb[0].mxu0
  %193 = vmatprep.mubr.bf16.mxu0 0
  %194 = vmatmul.mubr.bf16.gmra.mrb[0].mxu0 %v123
  %v195 = vpop.f32.mrb[0].mxu0
  %v196 = vadd.f32 %v111, %v195
  %v197 = vpop.f32.mrb[0].mxu0
  %v198 = vpop.f32.mrb[0].mxu0
  %v199 = vpop.f32.mrb[0].mxu0
  %200 = vdwg.mxu0
  %v202 = vsel %vm112, %v50, 0
  %v205 = vsel %vm112, %v51, 0
  %v208 = vsel %vm112, %v52, 0
  %v211 = vsel %vm112, %v53, 0
  %v214 = vsel %vm112, %v72, 0
  %v217 = vsel %vm112, %v73, 0
  %v220 = vsel %vm112, %v74, 0
  %v223 = vsel %vm112, %v75, 0
  %225 = vmatprep.subr.bf16.mxu0 0
  %226 = vmatpush1.bf16.xpose.msra.mxu0 %v214
  %227 = vmatprep.subr.bf16.mxu0 0
  %228 = vmatpush1.bf16.xpose.msra.mxu0 %v217
  %229 = vmatprep.subr.bf16.mxu0 0
  %230 = vmatpush1.bf16.xpose.msra.mxu0 %v220
  %231 = vmatprep.subr.bf16.mxu0 0
  %232 = vmatpush1.bf16.xpose.msra.mxu0 %v223
  %233 = vmatprep.subr.bf16.mxu0 0
  %234 = vmatpush1.bf16.xpose.msra.mxu0 0
  %235 = vmatprep.subr.bf16.mxu0 0
  %236 = vmatpush1.bf16.xpose.msra.mxu0 0
  %237 = vmatprep.subr.bf16.mxu0 0
  %238 = vmatpush1.bf16.xpose.msra.mxu0 0
  %239 = vmatprep.subr.bf16.mxu0 0
  %240 = vmatpush1.bf16.xpose.msra.mxu0 0
  %241 = vmatprep.subr.bf16.mxu0 0
  %242 = vmatpush1.bf16.xpose.msra.mxu0 0
  %243 = vmatprep.subr.bf16.mxu0 0
  %244 = vmatpush1.bf16.xpose.msra.mxu0 0
  %245 = vmatprep.subr.bf16.mxu0 0
  %246 = vmatpush1.bf16.xpose.msra.mxu0 0
  %247 = vmatprep.subr.bf16.mxu0 0
  %248 = vmatpush1.bf16.xpose.msra.mxu0 0
  %249 = vmatprep.subr.bf16.mxu0 0
  %250 = vmatpush1.bf16.xpose.msra.mxu0 0
  %251 = vmatprep.subr.bf16.mxu0 0
  %252 = vmatpush1.bf16.xpose.msra.mxu0 0
  %253 = vmatprep.subr.bf16.mxu0 0
  %254 = vmatpush1.bf16.xpose.msra.mxu0 0
  %255 = vmatprep.subr.bf16.mxu0 0
  %256 = vmatpush1.bf16.xpose.msra.mxu0 0
  %257 = vmatprep.mubr.bf16.mxu0 0
  %258 = vmatmul.mubr.bf16.gmra.mrb[0].mxu0 %v202
  %v259 = vpop.f32.mrb[0].mxu0
  %v260 = vadd.f32 %v105, %v259
  %v261 = vpop.f32.mrb[0].mxu0
  %v262 = vpop.f32.mrb[0].mxu0
  %v263 = vadd.f32 %v106, %v262
  %v264 = vpop.f32.mrb[0].mxu0
  %265 = vmatprep.mubr.bf16.mxu0 0
  %266 = vmatmul.mubr.bf16.gmra.mrb[0].mxu0 %v205
  %v267 = vpop.f32.mrb[0].mxu0
  %v268 = vadd.f32 %v107, %v267
  %v269 = vpop.f32.mrb[0].mxu0
  %v270 = vpop.f32.mrb[0].mxu0
  %v271 = vadd.f32 %v108, %v270
  %v272 = vpop.f32.mrb[0].mxu0
  %273 = vmatprep.mubr.bf16.mxu0 0
  %274 = vmatmul.mubr.bf16.gmra.mrb[0].mxu0 %v208
  %v275 = vpop.f32.mrb[0].mxu0
  %v276 = vadd.f32 %v109, %v275
  %v277 = vpop.f32.mrb[0].mxu0
  %v278 = vpop.f32.mrb[0].mxu0
  %v279 = vadd.f32 %v110, %v278
  %v280 = vpop.f32.mrb[0].mxu0
  %281 = vmatprep.mubr.bf16.mxu0 0
  %282 = vmatmul.mubr.bf16.gmra.mrb[0].mxu0 %v211
  %v283 = vpop.f32.mrb[0].mxu0
  %v284 = vadd.f32 %v111, %v283
  %v285 = vpop.f32.mrb[0].mxu0
  %v286 = vpop.f32.mrb[0].mxu0
  %v287 = vpop.f32.mrb[0].mxu0
  %288 = vdwg.mxu0
  %vm289 = vcmask 457728
  %v290 = vsel %vm289, %v172, -inf
  %291 = vmax.xlane.f32.xlu0 %v290
  %v292 = vpop.xlane.xlu0 %291
  %v293 = vsel %vm289, %v175, -inf
  %294 = vmax.xlane.f32.xlu0 %v293
  %v295 = vpop.xlane.xlu0 %294
  %v296 = vsel %vm289, %v180, -inf
  %297 = vmax.xlane.f32.xlu0 %v296
  %v298 = vpop.xlane.xlu0 %297
  %v299 = vsel %vm289, %v183, -inf
  %300 = vmax.xlane.f32.xlu0 %v299
  %v301 = vpop.xlane.xlu0 %300
  %v302 = vsel %vm289, %v188, -inf
  %303 = vmax.xlane.f32.xlu0 %v302
  %v304 = vpop.xlane.xlu0 %303
  %v305 = vsel %vm289, %v191, -inf
  %306 = vmax.xlane.f32.xlu0 %v305
  %v307 = vpop.xlane.xlu0 %306
  %v308 = vsel %vm289, %v196, -inf
  %309 = vmax.xlane.f32.xlu0 %v308
  %v310 = vpop.xlane.xlu0 %309
  %v311 = vsel %vm289, %v260, -inf
  %312 = vmax.xlane.f32.xlu0 %v311
  %v313 = vpop.xlane.xlu0 %312
  %v314 = vsel %vm289, %v263, -inf
  %315 = vmax.xlane.f32.xlu0 %v314
  %v316 = vpop.xlane.xlu0 %315
  %v317 = vsel %vm289, %v268, -inf
  %318 = vmax.xlane.f32.xlu0 %v317
  %v319 = vpop.xlane.xlu0 %318
  %v320 = vsel %vm289, %v271, -inf
  %321 = vmax.xlane.f32.xlu0 %v320
  %v322 = vpop.xlane.xlu0 %321
  %v323 = vsel %vm289, %v276, -inf
  %324 = vmax.xlane.f32.xlu0 %v323
  %v325 = vpop.xlane.xlu0 %324
  %v326 = vsel %vm289, %v279, -inf
  %327 = vmax.xlane.f32.xlu0 %v326
  %v328 = vpop.xlane.xlu0 %327
  %v329 = vsel %vm289, %v284, -inf
  %330 = vmax.xlane.f32.xlu0 %v329
  %v331 = vpop.xlane.xlu0 %330
  %v332 = vsub.f32 %v172, %v292
  %v333 = vsub.f32 %v175, %v295
  %v334 = vsub.f32 %v180, %v298
  %v335 = vsub.f32 %v183, %v301
  %v336 = vsub.f32 %v188, %v304
  %v337 = vsub.f32 %v191, %v307
  %v338 = vsub.f32 %v196, %v310
  %v339 = vsub.f32 %v260, %v313
  %v340 = vsub.f32 %v263, %v316
  %v341 = vsub.f32 %v268, %v319
  %v342 = vsub.f32 %v271, %v322
  %v343 = vsub.f32 %v276, %v325
  %v344 = vsub.f32 %v279, %v328
  %v345 = vsub.f32 %v284, %v331
  %v346 = vmul.f32 %v332, 1.442695
  %v347 = vpow.pop %v346
  %v348 = vmul.f32 %v333, 1.442695
  %v349 = vpow.pop %v348
  %v350 = vmul.f32 %v334, 1.442695
  %v351 = vpow.pop %v350
  %v352 = vmul.f32 %v335, 1.442695
  %v353 = vpow.pop %v352
  %v354 = vmul.f32 %v336, 1.442695
  %v355 = vpow.pop %v354
  %v356 = vmul.f32 %v337, 1.442695
  %v357 = vpow.pop %v356
  %v358 = vmul.f32 %v338, 1.442695
  %v359 = vpow.pop %v358
  %v360 = vmul.f32 %v339, 1.442695
  %v361 = vpow.pop %v360
  %v362 = vmul.f32 %v340, 1.442695
  %v363 = vpow.pop %v362
  %v364 = vmul.f32 %v341, 1.442695
  %v365 = vpow.pop %v364
  %v366 = vmul.f32 %v342, 1.442695
  %v367 = vpow.pop %v366
  %v368 = vmul.f32 %v343, 1.442695
  %v369 = vpow.pop %v368
  %v370 = vmul.f32 %v344, 1.442695
  %v371 = vpow.pop %v370
  %v372 = vmul.f32 %v345, 1.442695
  %v373 = vpow.pop %v372
  %v374 = vsel %vm289, %v347, 0.0
  %375 = vadd.xlane.f32.xlu0 %v374
  %v376 = vpop.xlane.xlu0 %375
  %v377 = vsel %vm289, %v349, 0.0
  %378 = vadd.xlane.f32.xlu0 %v377
  %v379 = vpop.xlane.xlu0 %378
  %v380 = vsel %vm289, %v351, 0.0
  %381 = vadd.xlane.f32.xlu0 %v380
  %v382 = vpop.xlane.xlu0 %381
  %v383 = vsel %vm289, %v353, 0.0
  %384 = vadd.xlane.f32.xlu0 %v383
  %v385 = vpop.xlane.xlu0 %384
  %v386 = vsel %vm289, %v355, 0.0
  %387 = vadd.xlane.f32.xlu0 %v386
  %v388 = vpop.xlane.xlu0 %387
  %v389 = vsel %vm289, %v357, 0.0
  %390 = vadd.xlane.f32.xlu0 %v389
  %v391 = vpop.xlane.xlu0 %390
  %v392 = vsel %vm289, %v359, 0.0
  %393 = vadd.xlane.f32.xlu0 %v392
  %v394 = vpop.xlane.xlu0 %393
  %v395 = vsel %vm289, %v361, 0.0
  %396 = vadd.xlane.f32.xlu0 %v395
  %v397 = vpop.xlane.xlu0 %396
  %v398 = vsel %vm289, %v363, 0.0
  %399 = vadd.xlane.f32.xlu0 %v398
  %v400 = vpop.xlane.xlu0 %399
  %v401 = vsel %vm289, %v365, 0.0
  %402 = vadd.xlane.f32.xlu0 %v401
  %v403 = vpop.xlane.xlu0 %402
  %v404 = vsel %vm289, %v367, 0.0
  %405 = vadd.xlane.f32.xlu0 %v404
  %v406 = vpop.xlane.xlu0 %405
  %v407 = vsel %vm289, %v369, 0.0
  %408 = vadd.xlane.f32.xlu0 %v407
  %v409 = vpop.xlane.xlu0 %408
  %v410 = vsel %vm289, %v371, 0.0
  %411 = vadd.xlane.f32.xlu0 %v410
  %v412 = vpop.xlane.xlu0 %411
  %v413 = vsel %vm289, %v373, 0.0
  %414 = vadd.xlane.f32.xlu0 %v413
  %v415 = vpop.xlane.xlu0 %414
  %v416 = vpack.c.bf16 %v349, %v347
  %v417 = vpack.c.bf16 %v353, %v351
  %v418 = vpack.c.bf16 %v357, %v355
  %v419 = vpack.c.bf16 %v359, %v359
  %v420 = vpack.c.bf16 %v363, %v361
  %v421 = vpack.c.bf16 %v367, %v365
  %v422 = vpack.c.bf16 %v371, %v369
  %v423 = vpack.c.bf16 %v373, %v373
  %v425 = vsel %vm289, %v416, 0
  %v428 = vsel %vm289, %v417, 0
  %v431 = vsel %vm289, %v418, 0
  %v434 = vsel %vm289, %v419, 0
  %vm436 = vcmask 1043456
  %v438 = vsel %vm436, %v93, 0
  %440 = vmatprep.subr.bf16.mxu0 0
  %441 = vmatpush1.bf16.msra.mxu0 %v90
  %442 = vmatprep.subr.bf16.mxu0 0
  %443 = vmatpush1.bf16.msra.mxu0 %v91
  %444 = vmatprep.subr.bf16.mxu0 0
  %445 = vmatpush1.bf16.msra.mxu0 %v92
  %446 = vmatprep.subr.bf16.mxu0 0
  %447 = vmatpush1.bf16.msra.mxu0 %v438
  %448 = vmatprep.subr.bf16.mxu0 0
  %449 = vmatpush1.bf16.msra.mxu0 0
  %450 = vmatprep.subr.bf16.mxu0 0
  %451 = vmatpush1.bf16.msra.mxu0 0
  %452 = vmatprep.subr.bf16.mxu0 0
  %453 = vmatpush1.bf16.msra.mxu0 0
  %454 = vmatprep.subr.bf16.mxu0 0
  %455 = vmatpush1.bf16.msra.mxu0 0
  %456 = vmatprep.subr.bf16.mxu0 0
  %457 = vmatpush1.bf16.msra.mxu0 0
  %458 = vmatprep.subr.bf16.mxu0 0
  %459 = vmatpush1.bf16.msra.mxu0 0
  %460 = vmatprep.subr.bf16.mxu0 0
  %461 = vmatpush1.bf16.msra.mxu0 0
  %462 = vmatprep.subr.bf16.mxu0 0
  %463 = vmatpush1.bf16.msra.mxu0 0
  %464 = vmatprep.subr.bf16.mxu0 0
  %465 = vmatpush1.bf16.msra.mxu0 0
  %466 = vmatprep.subr.bf16.mxu0 0
  %467 = vmatpush1.bf16.msra.mxu0 0
  %468 = vmatprep.subr.bf16.mxu0 0
  %469 = vmatpush1.bf16.msra.mxu0 0
  %470 = vmatprep.subr.bf16.mxu0 0
  %471 = vmatpush1.bf16.msra.mxu0 0
  %472 = vmatprep.mubr.bf16.mxu0 0
  %473 = vmatmul.mubr.bf16.gmra.mrb[0].mxu0 %v425
  %v474 = vpop.f32.mrb[0].mxu0
  %v475 = vadd.f32 0.0, %v474
  %v476 = vpop.f32.mrb[0].mxu0
  %v477 = vpop.f32.mrb[0].mxu0
  %v478 = vadd.f32 0.0, %v477
  %v479 = vpop.f32.mrb[0].mxu0
  %480 = vmatprep.mubr.bf16.mxu0 0
  %481 = vmatmul.mubr.bf16.gmra.mrb[0].mxu0 %v428
  %v482 = vpop.f32.mrb[0].mxu0
  %v483 = vadd.f32 0.0, %v482
  %v484 = vpop.f32.mrb[0].mxu0
  %v485 = vpop.f32.mrb[0].mxu0
  %v486 = vadd.f32 0.0, %v485
  %v487 = vpop.f32.mrb[0].mxu0
  %488 = vmatprep.mubr.bf16.mxu0 0
  %489 = vmatmul.mubr.bf16.gmra.mrb[0].mxu0 %v431
  %v490 = vpop.f32.mrb[0].mxu0
  %v491 = vadd.f32 0.0, %v490
  %v492 = vpop.f32.mrb[0].mxu0
  %v493 = vpop.f32.mrb[0].mxu0
  %v494 = vadd.f32 0.0, %v493
  %v495 = vpop.f32.mrb[0].mxu0
  %496 = vmatprep.mubr.bf16.mxu0 0
  %497 = vmatmul.mubr.bf16.gmra.mrb[0].mxu0 %v434
  %v498 = vpop.f32.mrb[0].mxu0
  %v499 = vadd.f32 0.0, %v498
  %v500 = vpop.f32.mrb[0].mxu0
  %v501 = vpop.f32.mrb[0].mxu0
  %v502 = vpop.f32.mrb[0].mxu0
  %503 = vdwg.mxu0
  %v505 = vsel %vm289, %v420, 0
  %v508 = vsel %vm289, %v421, 0
  %v511 = vsel %vm289, %v422, 0
  %v514 = vsel %vm289, %v423, 0
  %v517 = vsel %vm436, %v97, 0
  %519 = vmatprep.subr.bf16.mxu0 0
  %520 = vmatpush1.bf16.msra.mxu0 %v94
  %521 = vmatprep.subr.bf16.mxu0 0
  %522 = vmatpush1.bf16.msra.mxu0 %v95
  %523 = vmatprep.subr.bf16.mxu0 0
  %524 = vmatpush1.bf16.msra.mxu0 %v96
  %525 = vmatprep.subr.bf16.mxu0 0
  %526 = vmatpush1.bf16.msra.mxu0 %v517
  %527 = vmatprep.subr.bf16.mxu0 0
  %528 = vmatpush1.bf16.msra.mxu0 0
  %529 = vmatprep.subr.bf16.mxu0 0
  %530 = vmatpush1.bf16.msra.mxu0 0
  %531 = vmatprep.subr.bf16.mxu0 0
  %532 = vmatpush1.bf16.msra.mxu0 0
  %533 = vmatprep.subr.bf16.mxu0 0
  %534 = vmatpush1.bf16.msra.mxu0 0
  %535 = vmatprep.subr.bf16.mxu0 0
  %536 = vmatpush1.bf16.msra.mxu0 0
  %537 = vmatprep.subr.bf16.mxu0 0
  %538 = vmatpush1.bf16.msra.mxu0 0
  %539 = vmatprep.subr.bf16.mxu0 0
  %540 = vmatpush1.bf16.msra.mxu0 0
  %541 = vmatprep.subr.bf16.mxu0 0
  %542 = vmatpush1.bf16.msra.mxu0 0
  %543 = vmatprep.subr.bf16.mxu0 0
  %544 = vmatpush1.bf16.msra.mxu0 0
  %545 = vmatprep.subr.bf16.mxu0 0
  %546 = vmatpush1.bf16.msra.mxu0 0
  %547 = vmatprep.subr.bf16.mxu0 0
  %548 = vmatpush1.bf16.msra.mxu0 0
  %549 = vmatprep.subr.bf16.mxu0 0
  %550 = vmatpush1.bf16.msra.mxu0 0
  %551 = vmatprep.mubr.bf16.mxu0 0
  %552 = vmatmul.mubr.bf16.gmra.mrb[0].mxu0 %v505
  %v553 = vpop.f32.mrb[0].mxu0
  %v554 = vadd.f32 0.0, %v553
  %v555 = vpop.f32.mrb[0].mxu0
  %v556 = vpop.f32.mrb[0].mxu0
  %v557 = vadd.f32 0.0, %v556
  %v558 = vpop.f32.mrb[0].mxu0
  %559 = vmatprep.mubr.bf16.mxu0 0
  %560 = vmatmul.mubr.bf16.gmra.mrb[0].mxu0 %v508
  %v561 = vpop.f32.mrb[0].mxu0
  %v562 = vadd.f32 0.0, %v561
  %v563 = vpop.f32.mrb[0].mxu0
  %v564 = vpop.f32.mrb[0].mxu0
  %v565 = vadd.f32 0.0, %v564
  %v566 = vpop.f32.mrb[0].mxu0
  %567 = vmatprep.mubr.bf16.mxu0 0
  %568 = vmatmul.mubr.bf16.gmra.mrb[0].mxu0 %v511
  %v569 = vpop.f32.mrb[0].mxu0
  %v570 = vadd.f32 0.0, %v569
  %v571 = vpop.f32.mrb[0].mxu0
  %v572 = vpop.f32.mrb[0].mxu0
  %v573 = vadd.f32 0.0, %v572
  %v574 = vpop.f32.mrb[0].mxu0
  %575 = vmatprep.mubr.bf16.mxu0 0
  %576 = vmatmul.mubr.bf16.gmra.mrb[0].mxu0 %v514
  %v577 = vpop.f32.mrb[0].mxu0
  %v578 = vadd.f32 0.0, %v577
  %v579 = vpop.f32.mrb[0].mxu0
  %v580 = vpop.f32.mrb[0].mxu0
  %v581 = vpop.f32.mrb[0].mxu0
  %582 = vdwg.mxu0
  %v583 = vrcp.pop %v376
  %v584 = vrcp.pop %v379
  %v585 = vrcp.pop %v382
  %v586 = vrcp.pop %v385
  %v587 = vrcp.pop %v388
  %v588 = vrcp.pop %v391
  %v589 = vrcp.pop %v394
  %v590 = vrcp.pop %v397
  %v591 = vrcp.pop %v400
  %v592 = vrcp.pop %v403
  %v593 = vrcp.pop %v406
  %v594 = vrcp.pop %v409
  %v595 = vrcp.pop %v412
  %v596 = vrcp.pop %v415
  %v597 = vmul.f32 %v475, %v583
  %v598 = vmul.f32 %v478, %v584
  %v599 = vmul.f32 %v483, %v585
  %v600 = vmul.f32 %v486, %v586
  %v601 = vmul.f32 %v491, %v587
  %v602 = vmul.f32 %v494, %v588
  %v603 = vmul.f32 %v499, %v589
  %v604 = vmul.f32 %v554, %v590
  %v605 = vmul.f32 %v557, %v591
  %v606 = vmul.f32 %v562, %v592
  %v607 = vmul.f32 %v565, %v593
  %v608 = vmul.f32 %v570, %v594
  %v609 = vmul.f32 %v573, %v595
  %v610 = vmul.f32 %v578, %v596
  %611 = vst.msk [vmem:[%s4] sm:$0xff] %vm112, %v597
  %612 = vst.msk [vmem:[%s4 + $0x8] sm:$0xff] %vm112, %v598
  %613 = vst.msk [vmem:[%s4 + $0x10] sm:$0xff] %vm112, %v599
  %614 = vst.msk [vmem:[%s4 + $0x18] sm:$0xff] %vm112, %v600
  %615 = vst.msk [vmem:[%s4 + $0x20] sm:$0xff] %vm112, %v601
  %616 = vst.msk [vmem:[%s4 + $0x28] sm:$0xff] %vm112, %v602
  %617 = vst.msk [vmem:[%s4 + $0x30] sm:$0xff] %vm112, %v603
  %618 = vst.msk [vmem:[%s4 + $0x38] sm:$0xff] %vm112, %v604
  %619 = vst.msk [vmem:[%s4 + $0x40] sm:$0xff] %vm112, %v605
  %620 = vst.msk [vmem:[%s4 + $0x48] sm:$0xff] %vm112, %v606
  %621 = vst.msk [vmem:[%s4 + $0x50] sm:$0xff] %vm112, %v607
  %622 = vst.msk [vmem:[%s4 + $0x58] sm:$0xff] %vm112, %v608
  %623 = vst.msk [vmem:[%s4 + $0x60] sm:$0xff] %vm112, %v609
  %624 = vst.msk [vmem:[%s4 + $0x68] sm:$0xff] %vm112, %v610
  // Predicated region
  $region18: #{tpu_custom_call.1} parent=0 // pred_check
    _
  $region19: #{tpu_custom_call.1} parent=0 // pred_check_branch
    %626 = sbr.rel (0) target = $region21
  $region20: #{tpu_custom_call.1} parent=0 // pred_region
    _
  $region21: #{tpu_custom_call.1} parent=0 // pred_fallthru
    _
  // Predicated region
  $region22: #{tpu_custom_call.1} parent=0 // pred_check
    _
  $region23: #{tpu_custom_call.1} parent=0 // pred_check_branch
    %628 = sbr.rel (0) target = $region25
  $region24: #{tpu_custom_call.1} parent=0 // pred_region
    _
  $region25: #{tpu_custom_call.1} parent=0 // pred_fallthru
    _

</llo_original>
